<compile_context>
chip_gen: v7x
topology: tpu7x:2x2x1
jax: 0.10.0
libtpu: 0.0.40
codegen_flags: <defaults>
</compile_context>

<pallas_src>
import jax
import jax.numpy as jnp
from jax import lax
from jax.experimental import pallas as pl
from jax.experimental.pallas import tpu as pltpu


def _round_up(x: int, m: int) -> int:
    return ((x + m - 1) // m) * m


def _cdiv(a: int, b: int) -> int:
    return -(-a // b)


def _linear_edge_kernel(e_ref, w_ref, b_ref, o_ref):
    """out = e^T @ w + b for one tile of edges.

    e_ref: (in_dim, tile_e)  transposed, lane-dense edge features
    w_ref: (in_dim, emb_dim) transposed nn.Linear weight
    b_ref: (1, emb_dim)      bias
    o_ref: (tile_e, emb_dim) output tile (last grid step may be partial)
    """
    acc = lax.dot_general(
        e_ref[...], w_ref[...],
        dimension_numbers=(((0,), (0,)), ((), ())),   # contract sublane dims
        preferred_element_type=jnp.float32,
        precision=lax.Precision.HIGHEST,
    )                                                  # (tile_e, emb_dim) f32
    o_ref[...] = (acc + b_ref[...]).astype(o_ref.dtype)


def linear_edge_encoder(edge_attr, weight, bias, *, tile_edges=4096,
                        out_dtype=jnp.float32):
    """y = edge_attr.reshape(-1, in_dim) @ weight.T + bias, via Pallas.

    edge_attr: any shape whose total size is divisible by in_dim
    weight:    (emb_dim, in_dim)   (PyTorch nn.Linear layout)
    bias:      (emb_dim,)
    """
    emb_dim, in_dim = weight.shape
    x = edge_attr.astype(jnp.float32).reshape(-1, in_dim)       # (E, in_dim)
    num_edges = x.shape[0]

    if num_edges == 0:
        # Degenerate: nothing to encode; avoid a zero-sized pallas_call.
        return jnp.zeros((0, emb_dim), dtype=out_dtype)

    # --- tile selection ---------------------------------------------------
    # Lane dim of the transposed input block must be a multiple of 128 (or the
    # full extent); keep >= 2 grid steps for medium problems so both v7x
    # TensorCores get work; for single-step problems shrink the block to the
    # (8-rounded) problem size.
    tile_e = _round_up(max(128, min(tile_edges, _round_up(num_edges, 128))), 128)
    if num_edges > 2048 and _cdiv(num_edges, tile_e) < 2:
        tile_e = _round_up(_cdiv(num_edges, 2), 128)
    if _cdiv(num_edges, tile_e) == 1:
        tile_e = max(8, _round_up(num_edges, 8))

    n_steps = _cdiv(num_edges, tile_e)
    edges_pad = n_steps * tile_e

    # --- operand layout ---------------------------------------------------
    # Transposed, lane-dense input (in_dim, edges_pad): the pad on the tiny
    # input keeps every input DMA full-size; the output is written at its
    # exact (num_edges, emb_dim) shape and the last partial block is clamped.
    x_t = jnp.pad(x, ((0, edges_pad - num_edges), (0, 0))).T    # (in_dim, edges_pad)
    w_t = weight.astype(jnp.float32).T                           # (in_dim, emb_dim)
    b2d = bias.astype(jnp.float32).reshape(1, emb_dim)           # (1, emb_dim)

    return pl.pallas_call(
        _linear_edge_kernel,
        out_shape=jax.ShapeDtypeStruct((num_edges, emb_dim), out_dtype),
        grid_spec=pltpu.PrefetchScalarGridSpec(
            num_scalar_prefetch=0,
            grid=(n_steps,),
            in_specs=[
                pl.BlockSpec((in_dim, tile_e), lambda i: (0, i)),
                pl.BlockSpec((in_dim, emb_dim), lambda i: (0, 0)),
                pl.BlockSpec((1, emb_dim), lambda i: (0, 0)),
            ],
            out_specs=pl.BlockSpec((tile_e, emb_dim), lambda i: (i, 0)),
        ),
        compiler_params=pltpu.CompilerParams(
            dimension_semantics=("parallel",),
            vmem_limit_bytes=32 * 1024 * 1024,
        ),
    )(x_t, w_t, b2d)


def linear_edge_encoder_forward(batch, weight, bias):
    """Mirror of LinearEdgeEncoder.forward: cast x to float, encode edge_attr."""
    new_x = batch["x"].astype(jnp.float32)
    new_edge_attr = linear_edge_encoder(batch["edge_attr"], weight, bias)
    return {**batch, "x": new_x, "edge_attr": new_edge_attr}


if __name__ == "__main__":
    key = jax.random.PRNGKey(0)

    def ref_linear(ea, w, b):
        d = w.shape[1]
        return (ea.reshape(-1, d).astype(jnp.float32)
                @ w.T.astype(jnp.float32) + b.astype(jnp.float32))

    # --- Case 1: MNIST/CIFAR10/ogbl-* config (in_dim=1), flat PyG edge_attr ---
    in_dim, emb_dim = 1, 32
    num_edges, num_nodes, node_feat = 64, 16, 4
    k_w, k_b, k_e, k_x, key = jax.random.split(key, 5)
    bound = 1.0 / (in_dim ** 0.5)
    weight = jax.random.uniform(k_w, (emb_dim, in_dim), jnp.float32, -bound, bound)
    bias = jax.random.uniform(k_b, (emb_dim,), jnp.float32, -bound, bound)
    edge_attr = jax.random.normal(k_e, (num_edges,), jnp.float32)   # flat, like PyG
    x_int = jax.random.randint(k_x, (num_nodes, node_feat), 0, 5, jnp.int32)

    batch = {"x": x_int, "edge_attr": edge_attr}
    out = linear_edge_encoder_forward(batch, weight, bias)
    jax.block_until_ready(out["edge_attr"])
    ref = ref_linear(edge_attr, weight, bias)
    assert out["edge_attr"].shape == (num_edges, emb_dim)
    assert out["x"].dtype == jnp.float32
    assert jnp.allclose(out["edge_attr"], ref, atol=1e-4, rtol=1e-3)

    # --- Case 2: ogbg-* config (in_dim=3), ragged edge count (partial block) ---
    in_dim2, emb_dim2 = 3, 32
    num_edges2 = 301
    k_w2, k_b2, k_e2, key = jax.random.split(key, 4)
    bound2 = 1.0 / (in_dim2 ** 0.5)
    weight2 = jax.random.uniform(k_w2, (emb_dim2, in_dim2), jnp.float32, -bound2, bound2)
    bias2 = jax.random.uniform(k_b2, (emb_dim2,), jnp.float32, -bound2, bound2)
    edge_attr2 = jax.random.normal(k_e2, (num_edges2, in_dim2), jnp.float32)

    out2 = linear_edge_encoder(edge_attr2, weight2, bias2)
    jax.block_until_ready(out2)
    ref2 = ref_linear(edge_attr2, weight2, bias2)
    assert out2.shape == (num_edges2, emb_dim2)
    assert jnp.allclose(out2, ref2, atol=1e-4, rtol=1e-3)

    # --- Case 3: attributed_triangle-* config (in_dim=2), medium edge count;
    #     exercises the 2-step grid split and a partial tail output block.
    in_dim3, emb_dim3 = 2, 48
    num_edges3 = 2600
    k_w3, k_b3, k_e3, key = jax.random.split(key, 4)
    bound3 = 1.0 / (in_dim3 ** 0.5)
    weight3 = jax.random.uniform(k_w3, (emb_dim3, in_dim3), jnp.float32, -bound3, bound3)
    bias3 = jax.random.uniform(k_b3, (emb_dim3,), jnp.float32, -bound3, bound3)
    edge_attr3 = jax.random.normal(k_e3, (num_edges3, in_dim3), jnp.float32)

    out3 = linear_edge_encoder(edge_attr3, weight3, bias3)
    jax.block_until_ready(out3)
    ref3 = ref_linear(edge_attr3, weight3, bias3)
    assert out3.shape == (num_edges3, emb_dim3)
    assert jnp.allclose(out3, ref3, atol=1e-4, rtol=1e-3)

    # --- Case 4: empty edge set (guarded path, no pallas_call) ---
    out4 = linear_edge_encoder(jnp.zeros((0, in_dim2), jnp.float32), weight2, bias2)
    assert out4.shape == (0, emb_dim2)

    print("KERNEL_OK")
</pallas_src>

<mosaic_0001>
module attributes {stable_mosaic.version = 11 : i64} {
  func.func @_linear_edge_kernel(%arg0: i32, %arg1: memref<1x64xf32, #tpu.memory_space<vmem>>, %arg2: memref<1x32xf32, #tpu.memory_space<vmem>>, %arg3: memref<1x32xf32, #tpu.memory_space<vmem>>, %arg4: memref<64x32xf32, #tpu.memory_space<vmem>>) attributes {dimension_semantics = [#tpu.dimension_semantics<parallel>], iteration_bounds = array<i64: 1>, scalar_prefetch = 0 : i64, scratch_operands = 0 : i64, tpu.core_type = #tpu.core_type<tc>, window_params = [{transform_indices = @transform_0, window_bounds = array<i64: 1, 64>}, {pipeline_mode = #tpu.pipeline_mode<synchronous>, transform_indices = @transform_1, window_bounds = array<i64: 1, 32>}, {pipeline_mode = #tpu.pipeline_mode<synchronous>, transform_indices = @transform_2, window_bounds = array<i64: 1, 32>}, {transform_indices = @transform_3, window_bounds = array<i64: 64, 32>}]} {
    %c0 = arith.constant 0 : index
    %c0_0 = arith.constant 0 : index
    %0 = vector.load %arg1[%c0, %c0_0] : memref<1x64xf32, #tpu.memory_space<vmem>>, vector<1x64xf32>
    %c0_1 = arith.constant 0 : index
    %c0_2 = arith.constant 0 : index
    %1 = vector.load %arg2[%c0_1, %c0_2] : memref<1x32xf32, #tpu.memory_space<vmem>>, vector<1x32xf32>
    %cst = arith.constant dense<0.000000e+00> : vector<64x32xf32>
    %2 = tpu.matmul %0, %1, %cst {dimension_numbers = #tpu.dot_dimension_numbers<[0], [0], [1], [1], [0, 1, 1, 1], [], []>, precision = #tpu.contract_precision<fp32>} : vector<1x64xf32>, vector<1x32xf32>, vector<64x32xf32> -> vector<64x32xf32>
    %c0_3 = arith.constant 0 : index
    %c0_4 = arith.constant 0 : index
    %3 = vector.load %arg3[%c0_3, %c0_4] : memref<1x32xf32, #tpu.memory_space<vmem>>, vector<1x32xf32>
    %4 = vector.broadcast %3 : vector<1x32xf32> to vector<64x32xf32>
    %5 = arith.addf %2, %4 : vector<64x32xf32>
    %c0_5 = arith.constant 0 : index
    %c0_6 = arith.constant 0 : index
    %6 = vector.load %arg4[%c0_5, %c0_6] : memref<64x32xf32, #tpu.memory_space<vmem>>, vector<64x32xf32>
    tpu.vector_store %arg4[%c0_5, %c0_6], %5 {strides = array<i32>} : memref<64x32xf32, #tpu.memory_space<vmem>>, vector<64x32xf32>,
    return
  }
  func.func @transform_0(%arg0: i32) -> (i32, i32) {
    %c0_i32 = arith.constant 0 : i32
    %c0_i32_0 = arith.constant 0 : i32
    return %c0_i32, %arg0 : i32, i32
  }
  func.func @transform_1(%arg0: i32) -> (i32, i32) {
    %c0_i32 = arith.constant 0 : i32
    %c0_i32_0 = arith.constant 0 : i32
    %c0_i32_1 = arith.constant 0 : i32
    return %c0_i32, %c0_i32_0 : i32, i32
  }
  func.func @transform_2(%arg0: i32) -> (i32, i32) {
    %c0_i32 = arith.constant 0 : i32
    %c0_i32_0 = arith.constant 0 : i32
    %c0_i32_1 = arith.constant 0 : i32
    return %c0_i32, %c0_i32_0 : i32, i32
  }
  func.func @transform_3(%arg0: i32) -> (i32, i32) {
    %c0_i32 = arith.constant 0 : i32
    %c0_i32_0 = arith.constant 0 : i32
    return %arg0, %c0_i32 : i32, i32
  }
}

</mosaic_0001>

<llo_original>
// kernel: tpu_custom_call.1
$region0: #{tpu_custom_call.1}
  #allocation0 [shape = 'u32[]', space=smem, size = 0x4, offset = 0x4, fixed_abs, tag = 'smem constant byte address 0x4 - core index']
  #allocation1 [shape = 'u32[144,128]{1,0:T(1,128)}', space=vmem, size = 0x12000, scoped, tag = 'internal scratch']
  %s0 = inlined_call_operand.hbm [shape: f32[1,64], index: 0, kind: input, shape index: {}]
  %s1 = inlined_call_operand.vmem [shape: f32[1,32], index: 1, kind: input, shape index: {}]
  %s2 = inlined_call_operand.vmem [shape: f32[1,32], index: 2, kind: input, shape index: {}]
  %s3 = inlined_call_operand.vmem [shape: f32[64,32], index: 3, kind: output, shape index: {}]
  %s4 = sld [smem:[#allocation0]]
  $region26: #{tpu_custom_call.1} parent=0
    _
  %s6 = ssub.s32 1, %s4
  %s7 = scalar_select 0, %s6, %s4
  $region1: #{tpu_custom_call.1} parent=0
    #allocation2 [shape = 'u8[512]{0}', space=vmem, size = 0x400, scoped, tag = 'input window, operand 0, single buffered']
    #allocation3 [shape = 's32[1]{0}', space=sflag, size = 0x4, scoped, tag = 'scoped memory for tpu_custom_call.1']
    %8 = vsyncpa [#allocation3], 0
    // Predicated region
    $region2: #{tpu_custom_call.1} parent=1 // pred_check
      _
    $region3: #{tpu_custom_call.1} parent=1 // pred_check_branch
      %10 = sbr.rel (0) target = $region5
    $region4: #{tpu_custom_call.1} parent=1 // pred_region
      %s12 = ssub.s32 16, 16
      %13 = vsyncadd [#allocation3], %s12
      %s15 = sshll.u32 [#allocation2], 4
      %s16 = int_to_ptr.vmem [resolvable:$true] %s15
      %18 = dma.hbm_to_vmem [thread:$0]  %s0, 16, %s16, [#allocation3]
    $region5: #{tpu_custom_call.1} parent=1 // pred_fallthru
      _
    // Predicated region
    $region6: #{tpu_custom_call.1} parent=1 // pred_check
      _
    $region7: #{tpu_custom_call.1} parent=1 // pred_check_branch
      %20 = sbr.rel (0) target = $region9
    $region8: #{tpu_custom_call.1} parent=1 // pred_region
      _
    $region9: #{tpu_custom_call.1} parent=1 // pred_fallthru
      _
    // Predicated region
    $region10: #{tpu_custom_call.1} parent=1 // pred_check
      _
    $region11: #{tpu_custom_call.1} parent=1 // pred_check_branch
      %22 = sbr.rel (0) target = $region13
    $region12: #{tpu_custom_call.1} parent=1 // pred_region
      _
    $region13: #{tpu_custom_call.1} parent=1 // pred_fallthru
      _
    // Predicated region
    $region14: #{tpu_custom_call.1} parent=1 // pred_check
      _
    $region15: #{tpu_custom_call.1} parent=1 // pred_check_branch
      %24 = sbr.rel (0) target = $region17
    $region16: #{tpu_custom_call.1} parent=1 // pred_region
      %25 = dma.done [#allocation3], 16
    $region17: #{tpu_custom_call.1} parent=1 // pred_fallthru
      _
    %v26 = vld [vmem:[#allocation2] sm:$0x1]
    %v27 = vld [vmem:[%s1] sm:$0x1]
    %v28 = vld [vmem:[%s2] sm:$0x1]
    %v30 = vlaneseq
    %v31 = vshrl.u32 %v30, 7
    %v32 = vsub.s32 0, %v31
    %v33 = vrot.slane %v28, %v32
    %35 = vxpose.xlu0.b32.start [1/16] %v26, 128
    %36 = vxpose.xlu0.b32.cont [2/16] 0.0, 128
    %37 = vxpose.xlu0.b32.cont [3/16] 0.0, 128
    %38 = vxpose.xlu0.b32.cont [4/16] 0.0, 128
    %39 = vxpose.xlu0.b32.cont [5/16] 0.0, 128
    %40 = vxpose.xlu0.b32.cont [6/16] 0.0, 128
    %41 = vxpose.xlu0.b32.cont [7/16] 0.0, 128
    %42 = vxpose.xlu0.b32.cont [8/16] 0.0, 128
    %43 = vxpose.xlu0.b32.cont [9/16] 0.0, 128
    %44 = vxpose.xlu0.b32.cont [10/16] 0.0, 128
    %45 = vxpose.xlu0.b32.cont [11/16] 0.0, 128
    %46 = vxpose.xlu0.b32.cont [12/16] 0.0, 128
    %47 = vxpose.xlu0.b32.cont [13/16] 0.0, 128
    %48 = vxpose.xlu0.b32.cont [14/16] 0.0, 128
    %49 = vxpose.xlu0.b32.cont [15/16] 0.0, 128
    %50 = vxpose.xlu0.b32.end [16/16] 0.0, 128
    %v51 = vpop.trf.xlu0
    %v52 = vpop.trf.xlu0
    %v53 = vpop.trf.xlu0
    %v54 = vpop.trf.xlu0
    %v55 = vpop.trf.xlu0
    %v56 = vpop.trf.xlu0
    %v57 = vpop.trf.xlu0
    %v58 = vpop.trf.xlu0
    %v59 = vpop.trf.xlu0
    %v60 = vpop.trf.xlu0
    %v61 = vpop.trf.xlu0
    %v62 = vpop.trf.xlu0
    %v63 = vpop.trf.xlu0
    %v64 = vpop.trf.xlu0
    %v65 = vpop.trf.xlu0
    %v66 = vpop.trf.xlu0
    %vm67 = vcmask 7168
    %v69 = vsel %vm67, %v51, 0
    %v72 = vsel %vm67, %v52, 0
    %v75 = vsel %vm67, %v53, 0
    %v78 = vsel %vm67, %v54, 0
    %v81 = vsel %vm67, %v55, 0
    %v84 = vsel %vm67, %v56, 0
    %v87 = vsel %vm67, %v57, 0
    %v90 = vsel %vm67, %v58, 0
    %vm92 = vcmask 1040384
    %v94 = vsel %vm92, %v27, 0
    %96 = vmatprep.subr.mxu0 0.0
    %v97 = vand.u32 %v94, 4294901760
    %98 = vmatpush1.msra.mxu0 %v97
    %99 = vmatprep.subr.mxu0 0.0
    %100 = vmatpush1.msra.mxu0 0.0
    %101 = vmatprep.subr.mxu0 0.0
    %102 = vmatpush1.msra.mxu0 0.0
    %103 = vmatprep.subr.mxu0 0.0
    %104 = vmatpush1.msra.mxu0 0.0
    %105 = vmatprep.subr.mxu0 0.0
    %106 = vmatpush1.msra.mxu0 0.0
    %107 = vmatprep.subr.mxu0 0.0
    %108 = vmatpush1.msra.mxu0 0.0
    %109 = vmatprep.subr.mxu0 0.0
    %110 = vmatpush1.msra.mxu0 0.0
    %111 = vmatprep.subr.mxu0 0.0
    %112 = vmatpush1.msra.mxu0 0.0
    %113 = vmatprep.subr.mxu0 0.0
    %114 = vmatpush1.msra.mxu0 0.0
    %115 = vmatprep.subr.mxu0 0.0
    %116 = vmatpush1.msra.mxu0 0.0
    %117 = vmatprep.subr.mxu0 0.0
    %118 = vmatpush1.msra.mxu0 0.0
    %119 = vmatprep.subr.mxu0 0.0
    %120 = vmatpush1.msra.mxu0 0.0
    %121 = vmatprep.subr.mxu0 0.0
    %122 = vmatpush1.msra.mxu0 0.0
    %123 = vmatprep.subr.mxu0 0.0
    %124 = vmatpush1.msra.mxu0 0.0
    %125 = vmatprep.subr.mxu0 0.0
    %126 = vmatpush1.msra.mxu0 0.0
    %127 = vmatprep.subr.mxu0 0.0
    %128 = vmatpush1.msra.mxu0 0.0
    %129 = vmatprep.subr.mxu0 0.0
    %130 = vmatpush1.msra.mxu0 0.0
    %131 = vmatprep.subr.mxu0 0.0
    %132 = vmatpush1.msra.mxu0 0.0
    %133 = vmatprep.subr.mxu0 0.0
    %134 = vmatpush1.msra.mxu0 0.0
    %135 = vmatprep.subr.mxu0 0.0
    %136 = vmatpush1.msra.mxu0 0.0
    %137 = vmatprep.subr.mxu0 0.0
    %138 = vmatpush1.msra.mxu0 0.0
    %139 = vmatprep.subr.mxu0 0.0
    %140 = vmatpush1.msra.mxu0 0.0
    %141 = vmatprep.subr.mxu0 0.0
    %142 = vmatpush1.msra.mxu0 0.0
    %143 = vmatprep.subr.mxu0 0.0
    %144 = vmatpush1.msra.mxu0 0.0
    %145 = vmatprep.subr.mxu0 0.0
    %146 = vmatpush1.msra.mxu0 0.0
    %147 = vmatprep.subr.mxu0 0.0
    %148 = vmatpush1.msra.mxu0 0.0
    %149 = vmatprep.subr.mxu0 0.0
    %150 = vmatpush1.msra.mxu0 0.0
    %151 = vmatprep.subr.mxu0 0.0
    %152 = vmatpush1.msra.mxu0 0.0
    %153 = vmatprep.subr.mxu0 0.0
    %154 = vmatpush1.msra.mxu0 0.0
    %155 = vmatprep.subr.mxu0 0.0
    %156 = vmatpush1.msra.mxu0 0.0
    %157 = vmatprep.subr.mxu0 0.0
    %158 = vmatpush1.msra.mxu0 0.0
    %159 = vmatprep.subr.mxu0 0.0
    %160 = vmatpush1.msra.mxu0 0.0
    %161 = vmatprep.mubr.f32.mxu0 0.0
    %v162 = vand.u32 %v69, 4294901760
    %v163 = vsub.f32 %v69, %v162
    %v164 = vand.u32 %v163, 4294901760
    %v165 = vsub.f32 %v163, %v164
    %v166 = vand.u32 %v165, 4294901760
    %167 = vmatmul.mubr.f32.gmra.mrb[0].mxu0 %v166
    %v168 = vpop.f32.mrb[0].mxu0
    %v169 = vadd.f32 %v33, %v168
    %v170 = vpop.f32.mrb[0].mxu0
    %171 = vmatprep.mubr.f32.mxu0 0.0
    %v172 = vand.u32 %v72, 4294901760
    %v173 = vsub.f32 %v72, %v172
    %v174 = vand.u32 %v173, 4294901760
    %v175 = vsub.f32 %v173, %v174
    %v176 = vand.u32 %v175, 4294901760
    %177 = vmatmul.mubr.f32.gmra.mrb[0].mxu0 %v176
    %v178 = vpop.f32.mrb[0].mxu0
    %v179 = vadd.f32 %v33, %v178
    %v180 = vpop.f32.mrb[0].mxu0
    %181 = vmatprep.mubr.f32.mxu0 0.0
    %v182 = vand.u32 %v75, 4294901760
    %v183 = vsub.f32 %v75, %v182
    %v184 = vand.u32 %v183, 4294901760
    %v185 = vsub.f32 %v183, %v184
    %v186 = vand.u32 %v185, 4294901760
    %187 = vmatmul.mubr.f32.gmra.mrb[0].mxu0 %v186
    %v188 = vpop.f32.mrb[0].mxu0
    %v189 = vadd.f32 %v33, %v188
    %v190 = vpop.f32.mrb[0].mxu0
    %191 = vmatprep.mubr.f32.mxu0 0.0
    %v192 = vand.u32 %v78, 4294901760
    %v193 = vsub.f32 %v78, %v192
    %v194 = vand.u32 %v193, 4294901760
    %v195 = vsub.f32 %v193, %v194
    %v196 = vand.u32 %v195, 4294901760
    %197 = vmatmul.mubr.f32.gmra.mrb[0].mxu0 %v196
    %v198 = vpop.f32.mrb[0].mxu0
    %v199 = vadd.f32 %v33, %v198
    %v200 = vpop.f32.mrb[0].mxu0
    %201 = vmatprep.mubr.f32.mxu0 0.0
    %v202 = vand.u32 %v81, 4294901760
    %v203 = vsub.f32 %v81, %v202
    %v204 = vand.u32 %v203, 4294901760
    %v205 = vsub.f32 %v203, %v204
    %v206 = vand.u32 %v205, 4294901760
    %207 = vmatmul.mubr.f32.gmra.mrb[0].mxu0 %v206
    %v208 = vpop.f32.mrb[0].mxu0
    %v209 = vadd.f32 %v33, %v208
    %v210 = vpop.f32.mrb[0].mxu0
    %211 = vmatprep.mubr.f32.mxu0 0.0
    %v212 = vand.u32 %v84, 4294901760
    %v213 = vsub.f32 %v84, %v212
    %v214 = vand.u32 %v213, 4294901760
    %v215 = vsub.f32 %v213, %v214
    %v216 = vand.u32 %v215, 4294901760
    %217 = vmatmul.mubr.f32.gmra.mrb[0].mxu0 %v216
    %v218 = vpop.f32.mrb[0].mxu0
    %v219 = vadd.f32 %v33, %v218
    %v220 = vpop.f32.mrb[0].mxu0
    %221 = vmatprep.mubr.f32.mxu0 0.0
    %v222 = vand.u32 %v87, 4294901760
    %v223 = vsub.f32 %v87, %v222
    %v224 = vand.u32 %v223, 4294901760
    %v225 = vsub.f32 %v223, %v224
    %v226 = vand.u32 %v225, 4294901760
    %227 = vmatmul.mubr.f32.gmra.mrb[0].mxu0 %v226
    %v228 = vpop.f32.mrb[0].mxu0
    %v229 = vadd.f32 %v33, %v228
    %v230 = vpop.f32.mrb[0].mxu0
    %231 = vmatprep.mubr.f32.mxu0 0.0
    %v232 = vand.u32 %v90, 4294901760
    %v233 = vsub.f32 %v90, %v232
    %v234 = vand.u32 %v233, 4294901760
    %v235 = vsub.f32 %v233, %v234
    %v236 = vand.u32 %v235, 4294901760
    %237 = vmatmul.mubr.f32.gmra.mrb[0].mxu0 %v236
    %v238 = vpop.f32.mrb[0].mxu0
    %v239 = vadd.f32 %v33, %v238
    %v240 = vpop.f32.mrb[0].mxu0
    %241 = vdwg.mxu0
    %242 = vmatprep.subr.mxu0 0.0
    %v243 = vand.u32 %v94, 4294901760
    %v244 = vsub.f32 %v94, %v243
    %v245 = vand.u32 %v244, 4294901760
    %v246 = vsub.f32 %v244, %v245
    %v247 = vand.u32 %v246, 4294901760
    %248 = vmatpush1.msra.mxu0 %v247
    %249 = vmatprep.subr.mxu0 0.0
    %250 = vmatpush1.msra.mxu0 0.0
    %251 = vmatprep.subr.mxu0 0.0
    %252 = vmatpush1.msra.mxu0 0.0
    %253 = vmatprep.subr.mxu0 0.0
    %254 = vmatpush1.msra.mxu0 0.0
    %255 = vmatprep.subr.mxu0 0.0
    %256 = vmatpush1.msra.mxu0 0.0
    %257 = vmatprep.subr.mxu0 0.0
    %258 = vmatpush1.msra.mxu0 0.0
    %259 = vmatprep.subr.mxu0 0.0
    %260 = vmatpush1.msra.mxu0 0.0
    %261 = vmatprep.subr.mxu0 0.0
    %262 = vmatpush1.msra.mxu0 0.0
    %263 = vmatprep.subr.mxu0 0.0
    %264 = vmatpush1.msra.mxu0 0.0
    %265 = vmatprep.subr.mxu0 0.0
    %266 = vmatpush1.msra.mxu0 0.0
    %267 = vmatprep.subr.mxu0 0.0
    %268 = vmatpush1.msra.mxu0 0.0
    %269 = vmatprep.subr.mxu0 0.0
    %270 = vmatpush1.msra.mxu0 0.0
    %271 = vmatprep.subr.mxu0 0.0
    %272 = vmatpush1.msra.mxu0 0.0
    %273 = vmatprep.subr.mxu0 0.0
    %274 = vmatpush1.msra.mxu0 0.0
    %275 = vmatprep.subr.mxu0 0.0
    %276 = vmatpush1.msra.mxu0 0.0
    %277 = vmatprep.subr.mxu0 0.0
    %278 = vmatpush1.msra.mxu0 0.0
    %279 = vmatprep.subr.mxu0 0.0
    %280 = vmatpush1.msra.mxu0 0.0
    %281 = vmatprep.subr.mxu0 0.0
    %282 = vmatpush1.msra.mxu0 0.0
    %283 = vmatprep.subr.mxu0 0.0
    %284 = vmatpush1.msra.mxu0 0.0
    %285 = vmatprep.subr.mxu0 0.0
    %286 = vmatpush1.msra.mxu0 0.0
    %287 = vmatprep.subr.mxu0 0.0
    %288 = vmatpush1.msra.mxu0 0.0
    %289 = vmatprep.subr.mxu0 0.0
    %290 = vmatpush1.msra.mxu0 0.0
    %291 = vmatprep.subr.mxu0 0.0
    %292 = vmatpush1.msra.mxu0 0.0
    %293 = vmatprep.subr.mxu0 0.0
    %294 = vmatpush1.msra.mxu0 0.0
    %295 = vmatprep.subr.mxu0 0.0
    %296 = vmatpush1.msra.mxu0 0.0
    %297 = vmatprep.subr.mxu0 0.0
    %298 = vmatpush1.msra.mxu0 0.0
    %299 = vmatprep.subr.mxu0 0.0
    %300 = vmatpush1.msra.mxu0 0.0
    %301 = vmatprep.subr.mxu0 0.0
    %302 = vmatpush1.msra.mxu0 0.0
    %303 = vmatprep.subr.mxu0 0.0
    %304 = vmatpush1.msra.mxu0 0.0
    %305 = vmatprep.subr.mxu0 0.0
    %306 = vmatpush1.msra.mxu0 0.0
    %307 = vmatprep.subr.mxu0 0.0
    %308 = vmatpush1.msra.mxu0 0.0
    %309 = vmatprep.subr.mxu0 0.0
    %310 = vmatpush1.msra.mxu0 0.0
    %311 = vmatprep.mubr.f32.mxu0 0.0
    %v312 = vand.u32 %v69, 4294901760
    %313 = vmatmul.mubr.f32.gmra.mrb[0].mxu0 %v312
    %v314 = vpop.f32.mrb[0].mxu0
    %v315 = vadd.f32 %v169, %v314
    %v316 = vpop.f32.mrb[0].mxu0
    %317 = vmatprep.mubr.f32.mxu0 0.0
    %v318 = vand.u32 %v72, 4294901760
    %319 = vmatmul.mubr.f32.gmra.mrb[0].mxu0 %v318
    %v320 = vpop.f32.mrb[0].mxu0
    %v321 = vadd.f32 %v179, %v320
    %v322 = vpop.f32.mrb[0].mxu0
    %323 = vmatprep.mubr.f32.mxu0 0.0
    %v324 = vand.u32 %v75, 4294901760
    %325 = vmatmul.mubr.f32.gmra.mrb[0].mxu0 %v324
    %v326 = vpop.f32.mrb[0].mxu0
    %v327 = vadd.f32 %v189, %v326
    %v328 = vpop.f32.mrb[0].mxu0
    %329 = vmatprep.mubr.f32.mxu0 0.0
    %v330 = vand.u32 %v78, 4294901760
    %331 = vmatmul.mubr.f32.gmra.mrb[0].mxu0 %v330
    %v332 = vpop.f32.mrb[0].mxu0
    %v333 = vadd.f32 %v199, %v332
    %v334 = vpop.f32.mrb[0].mxu0
    %335 = vmatprep.mubr.f32.mxu0 0.0
    %v336 = vand.u32 %v81, 4294901760
    %337 = vmatmul.mubr.f32.gmra.mrb[0].mxu0 %v336
    %v338 = vpop.f32.mrb[0].mxu0
    %v339 = vadd.f32 %v209, %v338
    %v340 = vpop.f32.mrb[0].mxu0
    %341 = vmatprep.mubr.f32.mxu0 0.0
    %v342 = vand.u32 %v84, 4294901760
    %343 = vmatmul.mubr.f32.gmra.mrb[0].mxu0 %v342
    %v344 = vpop.f32.mrb[0].mxu0
    %v345 = vadd.f32 %v219, %v344
    %v346 = vpop.f32.mrb[0].mxu0
    %347 = vmatprep.mubr.f32.mxu0 0.0
    %v348 = vand.u32 %v87, 4294901760
    %349 = vmatmul.mubr.f32.gmra.mrb[0].mxu0 %v348
    %v350 = vpop.f32.mrb[0].mxu0
    %v351 = vadd.f32 %v229, %v350
    %v352 = vpop.f32.mrb[0].mxu0
    %353 = vmatprep.mubr.f32.mxu0 0.0
    %v354 = vand.u32 %v90, 4294901760
    %355 = vmatmul.mubr.f32.gmra.mrb[0].mxu0 %v354
    %v356 = vpop.f32.mrb[0].mxu0
    %v357 = vadd.f32 %v239, %v356
    %v358 = vpop.f32.mrb[0].mxu0
    %359 = vdwg.mxu0
    %360 = vmatprep.subr.mxu0 0.0
    %v361 = vand.u32 %v94, 4294901760
    %v362 = vsub.f32 %v94, %v361
    %363 = vmatpush1.msra.mxu0 %v362
    %364 = vmatprep.subr.mxu0 0.0
    %365 = vmatpush1.msra.mxu0 0.0
    %366 = vmatprep.subr.mxu0 0.0
    %367 = vmatpush1.msra.mxu0 0.0
    %368 = vmatprep.subr.mxu0 0.0
    %369 = vmatpush1.msra.mxu0 0.0
    %370 = vmatprep.subr.mxu0 0.0
    %371 = vmatpush1.msra.mxu0 0.0
    %372 = vmatprep.subr.mxu0 0.0
    %373 = vmatpush1.msra.mxu0 0.0
    %374 = vmatprep.subr.mxu0 0.0
    %375 = vmatpush1.msra.mxu0 0.0
    %376 = vmatprep.subr.mxu0 0.0
    %377 = vmatpush1.msra.mxu0 0.0
    %378 = vmatprep.subr.mxu0 0.0
    %379 = vmatpush1.msra.mxu0 0.0
    %380 = vmatprep.subr.mxu0 0.0
    %381 = vmatpush1.msra.mxu0 0.0
    %382 = vmatprep.subr.mxu0 0.0
    %383 = vmatpush1.msra.mxu0 0.0
    %384 = vmatprep.subr.mxu0 0.0
    %385 = vmatpush1.msra.mxu0 0.0
    %386 = vmatprep.subr.mxu0 0.0
    %387 = vmatpush1.msra.mxu0 0.0
    %388 = vmatprep.subr.mxu0 0.0
    %389 = vmatpush1.msra.mxu0 0.0
    %390 = vmatprep.subr.mxu0 0.0
    %391 = vmatpush1.msra.mxu0 0.0
    %392 = vmatprep.subr.mxu0 0.0
    %393 = vmatpush1.msra.mxu0 0.0
    %394 = vmatprep.subr.mxu0 0.0
    %395 = vmatpush1.msra.mxu0 0.0
    %396 = vmatprep.subr.mxu0 0.0
    %397 = vmatpush1.msra.mxu0 0.0
    %398 = vmatprep.subr.mxu0 0.0
    %399 = vmatpush1.msra.mxu0 0.0
    %400 = vmatprep.subr.mxu0 0.0
    %401 = vmatpush1.msra.mxu0 0.0
    %402 = vmatprep.subr.mxu0 0.0
    %403 = vmatpush1.msra.mxu0 0.0
    %404 = vmatprep.subr.mxu0 0.0
    %405 = vmatpush1.msra.mxu0 0.0
    %406 = vmatprep.subr.mxu0 0.0
    %407 = vmatpush1.msra.mxu0 0.0
    %408 = vmatprep.subr.mxu0 0.0
    %409 = vmatpush1.msra.mxu0 0.0
    %410 = vmatprep.subr.mxu0 0.0
    %411 = vmatpush1.msra.mxu0 0.0
    %412 = vmatprep.subr.mxu0 0.0
    %413 = vmatpush1.msra.mxu0 0.0
    %414 = vmatprep.subr.mxu0 0.0
    %415 = vmatpush1.msra.mxu0 0.0
    %416 = vmatprep.subr.mxu0 0.0
    %417 = vmatpush1.msra.mxu0 0.0
    %418 = vmatprep.subr.mxu0 0.0
    %419 = vmatpush1.msra.mxu0 0.0
    %420 = vmatprep.subr.mxu0 0.0
    %421 = vmatpush1.msra.mxu0 0.0
    %422 = vmatprep.subr.mxu0 0.0
    %423 = vmatpush1.msra.mxu0 0.0
    %424 = vmatprep.subr.mxu0 0.0
    %425 = vmatpush1.msra.mxu0 0.0
    %426 = vmatprep.mubr.f32.mxu0 0.0
    %v427 = vand.u32 %v69, 4294901760
    %v428 = vsub.f32 %v69, %v427
    %429 = vmatmul.mubr.f32.gmra.mrb[0].mxu0 %v428
    %v430 = vpop.f32.mrb[0].mxu0
    %v431 = vadd.f32 %v315, %v430
    %v432 = vpop.f32.mrb[0].mxu0
    %433 = vmatprep.mubr.f32.mxu0 0.0
    %v434 = vand.u32 %v72, 4294901760
    %v435 = vsub.f32 %v72, %v434
    %436 = vmatmul.mubr.f32.gmra.mrb[0].mxu0 %v435
    %v437 = vpop.f32.mrb[0].mxu0
    %v438 = vadd.f32 %v321, %v437
    %v439 = vpop.f32.mrb[0].mxu0
    %440 = vmatprep.mubr.f32.mxu0 0.0
    %v441 = vand.u32 %v75, 4294901760
    %v442 = vsub.f32 %v75, %v441
    %443 = vmatmul.mubr.f32.gmra.mrb[0].mxu0 %v442
    %v444 = vpop.f32.mrb[0].mxu0
    %v445 = vadd.f32 %v327, %v444
    %v446 = vpop.f32.mrb[0].mxu0
    %447 = vmatprep.mubr.f32.mxu0 0.0
    %v448 = vand.u32 %v78, 4294901760
    %v449 = vsub.f32 %v78, %v448
    %450 = vmatmul.mubr.f32.gmra.mrb[0].mxu0 %v449
    %v451 = vpop.f32.mrb[0].mxu0
    %v452 = vadd.f32 %v333, %v451
    %v453 = vpop.f32.mrb[0].mxu0
    %454 = vmatprep.mubr.f32.mxu0 0.0
    %v455 = vand.u32 %v81, 4294901760
    %v456 = vsub.f32 %v81, %v455
    %457 = vmatmul.mubr.f32.gmra.mrb[0].mxu0 %v456
    %v458 = vpop.f32.mrb[0].mxu0
    %v459 = vadd.f32 %v339, %v458
    %v460 = vpop.f32.mrb[0].mxu0
    %461 = vmatprep.mubr.f32.mxu0 0.0
    %v462 = vand.u32 %v84, 4294901760
    %v463 = vsub.f32 %v84, %v462
    %464 = vmatmul.mubr.f32.gmra.mrb[0].mxu0 %v463
    %v465 = vpop.f32.mrb[0].mxu0
    %v466 = vadd.f32 %v345, %v465
    %v467 = vpop.f32.mrb[0].mxu0
    %468 = vmatprep.mubr.f32.mxu0 0.0
    %v469 = vand.u32 %v87, 4294901760
    %v470 = vsub.f32 %v87, %v469
    %471 = vmatmul.mubr.f32.gmra.mrb[0].mxu0 %v470
    %v472 = vpop.f32.mrb[0].mxu0
    %v473 = vadd.f32 %v351, %v472
    %v474 = vpop.f32.mrb[0].mxu0
    %475 = vmatprep.mubr.f32.mxu0 0.0
    %v476 = vand.u32 %v90, 4294901760
    %v477 = vsub.f32 %v90, %v476
    %478 = vmatmul.mubr.f32.gmra.mrb[0].mxu0 %v477
    %v479 = vpop.f32.mrb[0].mxu0
    %v480 = vadd.f32 %v357, %v479
    %v481 = vpop.f32.mrb[0].mxu0
    %482 = vdwg.mxu0
    %483 = vmatprep.subr.mxu0 0.0
    %v484 = vand.u32 %v94, 4294901760
    %485 = vmatpush1.msra.mxu0 %v484
    %486 = vmatprep.subr.mxu0 0.0
    %487 = vmatpush1.msra.mxu0 0.0
    %488 = vmatprep.subr.mxu0 0.0
    %489 = vmatpush1.msra.mxu0 0.0
    %490 = vmatprep.subr.mxu0 0.0
    %491 = vmatpush1.msra.mxu0 0.0
    %492 = vmatprep.subr.mxu0 0.0
    %493 = vmatpush1.msra.mxu0 0.0
    %494 = vmatprep.subr.mxu0 0.0
    %495 = vmatpush1.msra.mxu0 0.0
    %496 = vmatprep.subr.mxu0 0.0
    %497 = vmatpush1.msra.mxu0 0.0
    %498 = vmatprep.subr.mxu0 0.0
    %499 = vmatpush1.msra.mxu0 0.0
    %500 = vmatprep.subr.mxu0 0.0
    %501 = vmatpush1.msra.mxu0 0.0
    %502 = vmatprep.subr.mxu0 0.0
    %503 = vmatpush1.msra.mxu0 0.0
    %504 = vmatprep.subr.mxu0 0.0
    %505 = vmatpush1.msra.mxu0 0.0
    %506 = vmatprep.subr.mxu0 0.0
    %507 = vmatpush1.msra.mxu0 0.0
    %508 = vmatprep.subr.mxu0 0.0
    %509 = vmatpush1.msra.mxu0 0.0
    %510 = vmatprep.subr.mxu0 0.0
    %511 = vmatpush1.msra.mxu0 0.0
    %512 = vmatprep.subr.mxu0 0.0
    %513 = vmatpush1.msra.mxu0 0.0
    %514 = vmatprep.subr.mxu0 0.0
    %515 = vmatpush1.msra.mxu0 0.0
    %516 = vmatprep.subr.mxu0 0.0
    %517 = vmatpush1.msra.mxu0 0.0
    %518 = vmatprep.subr.mxu0 0.0
    %519 = vmatpush1.msra.mxu0 0.0
    %520 = vmatprep.subr.mxu0 0.0
    %521 = vmatpush1.msra.mxu0 0.0
    %522 = vmatprep.subr.mxu0 0.0
    %523 = vmatpush1.msra.mxu0 0.0
    %524 = vmatprep.subr.mxu0 0.0
    %525 = vmatpush1.msra.mxu0 0.0
    %526 = vmatprep.subr.mxu0 0.0
    %527 = vmatpush1.msra.mxu0 0.0
    %528 = vmatprep.subr.mxu0 0.0
    %529 = vmatpush1.msra.mxu0 0.0
    %530 = vmatprep.subr.mxu0 0.0
    %531 = vmatpush1.msra.mxu0 0.0
    %532 = vmatprep.subr.mxu0 0.0
    %533 = vmatpush1.msra.mxu0 0.0
    %534 = vmatprep.subr.mxu0 0.0
    %535 = vmatpush1.msra.mxu0 0.0
    %536 = vmatprep.subr.mxu0 0.0
    %537 = vmatpush1.msra.mxu0 0.0
    %538 = vmatprep.subr.mxu0 0.0
    %539 = vmatpush1.msra.mxu0 0.0
    %540 = vmatprep.subr.mxu0 0.0
    %541 = vmatpush1.msra.mxu0 0.0
    %542 = vmatprep.subr.mxu0 0.0
    %543 = vmatpush1.msra.mxu0 0.0
    %544 = vmatprep.subr.mxu0 0.0
    %545 = vmatpush1.msra.mxu0 0.0
    %546 = vmatprep.subr.mxu0 0.0
    %547 = vmatpush1.msra.mxu0 0.0
    %548 = vmatprep.mubr.f32.mxu0 0.0
    %v549 = vand.u32 %v69, 4294901760
    %v550 = vsub.f32 %v69, %v549
    %v551 = vand.u32 %v550, 4294901760
    %552 = vmatmul.mubr.f32.gmra.mrb[0].mxu0 %v551
    %v553 = vpop.f32.mrb[0].mxu0
    %v554 = vadd.f32 %v431, %v553
    %v555 = vpop.f32.mrb[0].mxu0
    %556 = vmatprep.mubr.f32.mxu0 0.0
    %v557 = vand.u32 %v72, 4294901760
    %v558 = vsub.f32 %v72, %v557
    %v559 = vand.u32 %v558, 4294901760
    %560 = vmatmul.mubr.f32.gmra.mrb[0].mxu0 %v559
    %v561 = vpop.f32.mrb[0].mxu0
    %v562 = vadd.f32 %v438, %v561
    %v563 = vpop.f32.mrb[0].mxu0
    %564 = vmatprep.mubr.f32.mxu0 0.0
    %v565 = vand.u32 %v75, 4294901760
    %v566 = vsub.f32 %v75, %v565
    %v567 = vand.u32 %v566, 4294901760
    %568 = vmatmul.mubr.f32.gmra.mrb[0].mxu0 %v567
    %v569 = vpop.f32.mrb[0].mxu0
    %v570 = vadd.f32 %v445, %v569
    %v571 = vpop.f32.mrb[0].mxu0
    %572 = vmatprep.mubr.f32.mxu0 0.0
    %v573 = vand.u32 %v78, 4294901760
    %v574 = vsub.f32 %v78, %v573
    %v575 = vand.u32 %v574, 4294901760
    %576 = vmatmul.mubr.f32.gmra.mrb[0].mxu0 %v575
    %v577 = vpop.f32.mrb[0].mxu0
    %v578 = vadd.f32 %v452, %v577
    %v579 = vpop.f32.mrb[0].mxu0
    %580 = vmatprep.mubr.f32.mxu0 0.0
    %v581 = vand.u32 %v81, 4294901760
    %v582 = vsub.f32 %v81, %v581
    %v583 = vand.u32 %v582, 4294901760
    %584 = vmatmul.mubr.f32.gmra.mrb[0].mxu0 %v583
    %v585 = vpop.f32.mrb[0].mxu0
    %v586 = vadd.f32 %v459, %v585
    %v587 = vpop.f32.mrb[0].mxu0
    %588 = vmatprep.mubr.f32.mxu0 0.0
    %v589 = vand.u32 %v84, 4294901760
    %v590 = vsub.f32 %v84, %v589
    %v591 = vand.u32 %v590, 4294901760
    %592 = vmatmul.mubr.f32.gmra.mrb[0].mxu0 %v591
    %v593 = vpop.f32.mrb[0].mxu0
    %v594 = vadd.f32 %v466, %v593
    %v595 = vpop.f32.mrb[0].mxu0
    %596 = vmatprep.mubr.f32.mxu0 0.0
    %v597 = vand.u32 %v87, 4294901760
    %v598 = vsub.f32 %v87, %v597
    %v599 = vand.u32 %v598, 4294901760
    %600 = vmatmul.mubr.f32.gmra.mrb[0].mxu0 %v599
    %v601 = vpop.f32.mrb[0].mxu0
    %v602 = vadd.f32 %v473, %v601
    %v603 = vpop.f32.mrb[0].mxu0
    %604 = vmatprep.mubr.f32.mxu0 0.0
    %v605 = vand.u32 %v90, 4294901760
    %v606 = vsub.f32 %v90, %v605
    %v607 = vand.u32 %v606, 4294901760
    %608 = vmatmul.mubr.f32.gmra.mrb[0].mxu0 %v607
    %v609 = vpop.f32.mrb[0].mxu0
    %v610 = vadd.f32 %v480, %v609
    %v611 = vpop.f32.mrb[0].mxu0
    %612 = vdwg.mxu0
    %613 = vmatprep.subr.mxu0 0.0
    %v614 = vand.u32 %v94, 4294901760
    %v615 = vsub.f32 %v94, %v614
    %v616 = vand.u32 %v615, 4294901760
    %617 = vmatpush1.msra.mxu0 %v616
    %618 = vmatprep.subr.mxu0 0.0
    %619 = vmatpush1.msra.mxu0 0.0
    %620 = vmatprep.subr.mxu0 0.0
    %621 = vmatpush1.msra.mxu0 0.0
    %622 = vmatprep.subr.mxu0 0.0
    %623 = vmatpush1.msra.mxu0 0.0
    %624 = vmatprep.subr.mxu0 0.0
    %625 = vmatpush1.msra.mxu0 0.0
    %626 = vmatprep.subr.mxu0 0.0
    %627 = vmatpush1.msra.mxu0 0.0
    %628 = vmatprep.subr.mxu0 0.0
    %629 = vmatpush1.msra.mxu0 0.0
    %630 = vmatprep.subr.mxu0 0.0
    %631 = vmatpush1.msra.mxu0 0.0
    %632 = vmatprep.subr.mxu0 0.0
    %633 = vmatpush1.msra.mxu0 0.0
    %634 = vmatprep.subr.mxu0 0.0
    %635 = vmatpush1.msra.mxu0 0.0
    %636 = vmatprep.subr.mxu0 0.0
    %637 = vmatpush1.msra.mxu0 0.0
    %638 = vmatprep.subr.mxu0 0.0
    %639 = vmatpush1.msra.mxu0 0.0
    %640 = vmatprep.subr.mxu0 0.0
    %641 = vmatpush1.msra.mxu0 0.0
    %642 = vmatprep.subr.mxu0 0.0
    %643 = vmatpush1.msra.mxu0 0.0
    %644 = vmatprep.subr.mxu0 0.0
    %645 = vmatpush1.msra.mxu0 0.0
    %646 = vmatprep.subr.mxu0 0.0
    %647 = vmatpush1.msra.mxu0 0.0
    %648 = vmatprep.subr.mxu0 0.0
    %649 = vmatpush1.msra.mxu0 0.0
    %650 = vmatprep.subr.mxu0 0.0
    %651 = vmatpush1.msra.mxu0 0.0
    %652 = vmatprep.subr.mxu0 0.0
    %653 = vmatpush1.msra.mxu0 0.0
    %654 = vmatprep.subr.mxu0 0.0
    %655 = vmatpush1.msra.mxu0 0.0
    %656 = vmatprep.subr.mxu0 0.0
    %657 = vmatpush1.msra.mxu0 0.0
    %658 = vmatprep.subr.mxu0 0.0
    %659 = vmatpush1.msra.mxu0 0.0
    %660 = vmatprep.subr.mxu0 0.0
    %661 = vmatpush1.msra.mxu0 0.0
    %662 = vmatprep.subr.mxu0 0.0
    %663 = vmatpush1.msra.mxu0 0.0
    %664 = vmatprep.subr.mxu0 0.0
    %665 = vmatpush1.msra.mxu0 0.0
    %666 = vmatprep.subr.mxu0 0.0
    %667 = vmatpush1.msra.mxu0 0.0
    %668 = vmatprep.subr.mxu0 0.0
    %669 = vmatpush1.msra.mxu0 0.0
    %670 = vmatprep.subr.mxu0 0.0
    %671 = vmatpush1.msra.mxu0 0.0
    %672 = vmatprep.subr.mxu0 0.0
    %673 = vmatpush1.msra.mxu0 0.0
    %674 = vmatprep.subr.mxu0 0.0
    %675 = vmatpush1.msra.mxu0 0.0
    %676 = vmatprep.subr.mxu0 0.0
    %677 = vmatpush1.msra.mxu0 0.0
    %678 = vmatprep.subr.mxu0 0.0
    %679 = vmatpush1.msra.mxu0 0.0
    %680 = vmatprep.mubr.f32.mxu0 0.0
    %v681 = vand.u32 %v69, 4294901760
    %682 = vmatmul.mubr.f32.gmra.mrb[0].mxu0 %v681
    %v683 = vpop.f32.mrb[0].mxu0
    %v684 = vadd.f32 %v554, %v683
    %v685 = vpop.f32.mrb[0].mxu0
    %686 = vmatprep.mubr.f32.mxu0 0.0
    %v687 = vand.u32 %v72, 4294901760
    %688 = vmatmul.mubr.f32.gmra.mrb[0].mxu0 %v687
    %v689 = vpop.f32.mrb[0].mxu0
    %v690 = vadd.f32 %v562, %v689
    %v691 = vpop.f32.mrb[0].mxu0
    %692 = vmatprep.mubr.f32.mxu0 0.0
    %v693 = vand.u32 %v75, 4294901760
    %694 = vmatmul.mubr.f32.gmra.mrb[0].mxu0 %v693
    %v695 = vpop.f32.mrb[0].mxu0
    %v696 = vadd.f32 %v570, %v695
    %v697 = vpop.f32.mrb[0].mxu0
    %698 = vmatprep.mubr.f32.mxu0 0.0
    %v699 = vand.u32 %v78, 4294901760
    %700 = vmatmul.mubr.f32.gmra.mrb[0].mxu0 %v699
    %v701 = vpop.f32.mrb[0].mxu0
    %v702 = vadd.f32 %v578, %v701
    %v703 = vpop.f32.mrb[0].mxu0
    %704 = vmatprep.mubr.f32.mxu0 0.0
    %v705 = vand.u32 %v81, 4294901760
    %706 = vmatmul.mubr.f32.gmra.mrb[0].mxu0 %v705
    %v707 = vpop.f32.mrb[0].mxu0
    %v708 = vadd.f32 %v586, %v707
    %v709 = vpop.f32.mrb[0].mxu0
    %710 = vmatprep.mubr.f32.mxu0 0.0
    %v711 = vand.u32 %v84, 4294901760
    %712 = vmatmul.mubr.f32.gmra.mrb[0].mxu0 %v711
    %v713 = vpop.f32.mrb[0].mxu0
    %v714 = vadd.f32 %v594, %v713
    %v715 = vpop.f32.mrb[0].mxu0
    %716 = vmatprep.mubr.f32.mxu0 0.0
    %v717 = vand.u32 %v87, 4294901760
    %718 = vmatmul.mubr.f32.gmra.mrb[0].mxu0 %v717
    %v719 = vpop.f32.mrb[0].mxu0
    %v720 = vadd.f32 %v602, %v719
    %v721 = vpop.f32.mrb[0].mxu0
    %722 = vmatprep.mubr.f32.mxu0 0.0
    %v723 = vand.u32 %v90, 4294901760
    %724 = vmatmul.mubr.f32.gmra.mrb[0].mxu0 %v723
    %v725 = vpop.f32.mrb[0].mxu0
    %v726 = vadd.f32 %v610, %v725
    %v727 = vpop.f32.mrb[0].mxu0
    %728 = vdwg.mxu0
    %729 = vmatprep.subr.mxu0 0.0
    %v730 = vand.u32 %v94, 4294901760
    %731 = vmatpush1.msra.mxu0 %v730
    %732 = vmatprep.subr.mxu0 0.0
    %733 = vmatpush1.msra.mxu0 0.0
    %734 = vmatprep.subr.mxu0 0.0
    %735 = vmatpush1.msra.mxu0 0.0
    %736 = vmatprep.subr.mxu0 0.0
    %737 = vmatpush1.msra.mxu0 0.0
    %738 = vmatprep.subr.mxu0 0.0
    %739 = vmatpush1.msra.mxu0 0.0
    %740 = vmatprep.subr.mxu0 0.0
    %741 = vmatpush1.msra.mxu0 0.0
    %742 = vmatprep.subr.mxu0 0.0
    %743 = vmatpush1.msra.mxu0 0.0
    %744 = vmatprep.subr.mxu0 0.0
    %745 = vmatpush1.msra.mxu0 0.0
    %746 = vmatprep.subr.mxu0 0.0
    %747 = vmatpush1.msra.mxu0 0.0
    %748 = vmatprep.subr.mxu0 0.0
    %749 = vmatpush1.msra.mxu0 0.0
    %750 = vmatprep.subr.mxu0 0.0
    %751 = vmatpush1.msra.mxu0 0.0
    %752 = vmatprep.subr.mxu0 0.0
    %753 = vmatpush1.msra.mxu0 0.0
    %754 = vmatprep.subr.mxu0 0.0
    %755 = vmatpush1.msra.mxu0 0.0
    %756 = vmatprep.subr.mxu0 0.0
    %757 = vmatpush1.msra.mxu0 0.0
    %758 = vmatprep.subr.mxu0 0.0
    %759 = vmatpush1.msra.mxu0 0.0
    %760 = vmatprep.subr.mxu0 0.0
    %761 = vmatpush1.msra.mxu0 0.0
    %762 = vmatprep.subr.mxu0 0.0
    %763 = vmatpush1.msra.mxu0 0.0
    %764 = vmatprep.subr.mxu0 0.0
    %765 = vmatpush1.msra.mxu0 0.0
    %766 = vmatprep.subr.mxu0 0.0
    %767 = vmatpush1.msra.mxu0 0.0
    %768 = vmatprep.subr.mxu0 0.0
    %769 = vmatpush1.msra.mxu0 0.0
    %770 = vmatprep.subr.mxu0 0.0
    %771 = vmatpush1.msra.mxu0 0.0
    %772 = vmatprep.subr.mxu0 0.0
    %773 = vmatpush1.msra.mxu0 0.0
    %774 = vmatprep.subr.mxu0 0.0
    %775 = vmatpush1.msra.mxu0 0.0
    %776 = vmatprep.subr.mxu0 0.0
    %777 = vmatpush1.msra.mxu0 0.0
    %778 = vmatprep.subr.mxu0 0.0
    %779 = vmatpush1.msra.mxu0 0.0
    %780 = vmatprep.subr.mxu0 0.0
    %781 = vmatpush1.msra.mxu0 0.0
    %782 = vmatprep.subr.mxu0 0.0
    %783 = vmatpush1.msra.mxu0 0.0
    %784 = vmatprep.subr.mxu0 0.0
    %785 = vmatpush1.msra.mxu0 0.0
    %786 = vmatprep.subr.mxu0 0.0
    %787 = vmatpush1.msra.mxu0 0.0
    %788 = vmatprep.subr.mxu0 0.0
    %789 = vmatpush1.msra.mxu0 0.0
    %790 = vmatprep.subr.mxu0 0.0
    %791 = vmatpush1.msra.mxu0 0.0
    %792 = vmatprep.subr.mxu0 0.0
    %793 = vmatpush1.msra.mxu0 0.0
    %794 = vmatprep.mubr.f32.mxu0 0.0
    %v795 = vand.u32 %v69, 4294901760
    %796 = vmatmul.mubr.f32.gmra.mrb[0].mxu0 %v795
    %v797 = vpop.f32.mrb[0].mxu0
    %v798 = vadd.f32 %v684, %v797
    %v799 = vpop.f32.mrb[0].mxu0
    %800 = vmatprep.mubr.f32.mxu0 0.0
    %v801 = vand.u32 %v72, 4294901760
    %802 = vmatmul.mubr.f32.gmra.mrb[0].mxu0 %v801
    %v803 = vpop.f32.mrb[0].mxu0
    %v804 = vadd.f32 %v690, %v803
    %v805 = vpop.f32.mrb[0].mxu0
    %806 = vmatprep.mubr.f32.mxu0 0.0
    %v807 = vand.u32 %v75, 4294901760
    %808 = vmatmul.mubr.f32.gmra.mrb[0].mxu0 %v807
    %v809 = vpop.f32.mrb[0].mxu0
    %v810 = vadd.f32 %v696, %v809
    %v811 = vpop.f32.mrb[0].mxu0
    %812 = vmatprep.mubr.f32.mxu0 0.0
    %v813 = vand.u32 %v78, 4294901760
    %814 = vmatmul.mubr.f32.gmra.mrb[0].mxu0 %v813
    %v815 = vpop.f32.mrb[0].mxu0
    %v816 = vadd.f32 %v702, %v815
    %v817 = vpop.f32.mrb[0].mxu0
    %818 = vmatprep.mubr.f32.mxu0 0.0
    %v819 = vand.u32 %v81, 4294901760
    %820 = vmatmul.mubr.f32.gmra.mrb[0].mxu0 %v819
    %v821 = vpop.f32.mrb[0].mxu0
    %v822 = vadd.f32 %v708, %v821
    %v823 = vpop.f32.mrb[0].mxu0
    %824 = vmatprep.mubr.f32.mxu0 0.0
    %v825 = vand.u32 %v84, 4294901760
    %826 = vmatmul.mubr.f32.gmra.mrb[0].mxu0 %v825
    %v827 = vpop.f32.mrb[0].mxu0
    %v828 = vadd.f32 %v714, %v827
    %v829 = vpop.f32.mrb[0].mxu0
    %830 = vmatprep.mubr.f32.mxu0 0.0
    %v831 = vand.u32 %v87, 4294901760
    %832 = vmatmul.mubr.f32.gmra.mrb[0].mxu0 %v831
    %v833 = vpop.f32.mrb[0].mxu0
    %v834 = vadd.f32 %v720, %v833
    %v835 = vpop.f32.mrb[0].mxu0
    %836 = vmatprep.mubr.f32.mxu0 0.0
    %v837 = vand.u32 %v90, 4294901760
    %838 = vmatmul.mubr.f32.gmra.mrb[0].mxu0 %v837
    %v839 = vpop.f32.mrb[0].mxu0
    %v840 = vadd.f32 %v726, %v839
    %v841 = vpop.f32.mrb[0].mxu0
    %842 = vdwg.mxu0
    %vm843 = vcmask 261120
    %844 = vst.msk [vmem:[%s3] sm:$0xff] %vm843, %v798
    %845 = vst.msk [vmem:[%s3 + $0x8] sm:$0xff] %vm843, %v804
    %846 = vst.msk [vmem:[%s3 + $0x10] sm:$0xff] %vm843, %v810
    %847 = vst.msk [vmem:[%s3 + $0x18] sm:$0xff] %vm843, %v816
    %848 = vst.msk [vmem:[%s3 + $0x20] sm:$0xff] %vm843, %v822
    %849 = vst.msk [vmem:[%s3 + $0x28] sm:$0xff] %vm843, %v828
    %850 = vst.msk [vmem:[%s3 + $0x30] sm:$0xff] %vm843, %v834
    %851 = vst.msk [vmem:[%s3 + $0x38] sm:$0xff] %vm843, %v840
    // Predicated region
    $region18: #{tpu_custom_call.1} parent=1 // pred_check
      _
    $region19: #{tpu_custom_call.1} parent=1 // pred_check_branch
      %853 = sbr.rel (0) target = $region21
    $region20: #{tpu_custom_call.1} parent=1 // pred_region
      _
    $region21: #{tpu_custom_call.1} parent=1 // pred_fallthru
      _
    // Predicated region
    $region22: #{tpu_custom_call.1} parent=1 // pred_check
      _
    $region23: #{tpu_custom_call.1} parent=1 // pred_check_branch
      %855 = sbr.rel (0) target = $region25
    $region24: #{tpu_custom_call.1} parent=1 // pred_region
      _
    $region25: #{tpu_custom_call.1} parent=1 // pred_fallthru
      _
    %856 = vsyncpa [#allocation3], 1

</llo_original>
